<compile_context>
chip_gen: v7x
topology: tpu7x:2x2x1
jax: 0.10.0
libtpu: 0.0.40
codegen_flags: <defaults>
</compile_context>

<pallas_src>
import functools

import jax
import jax.numpy as jnp
from jax.experimental import pallas as pl
from jax.experimental.pallas import tpu as pltpu


def _cdiv(a, b):
    return (a + b - 1) // b


def _round_up(x, m):
    return ((x + m - 1) // m) * m


def _mlp_kernel(x_ref, w0_ref, b0_ref, w1_ref, b1_ref,
                w2_ref, b2_ref, w3_ref, b3_ref, o_ref):
    """Fused 4-layer MLP (ReLU on first three layers) for one row-tile.

    x arrives as f32 straight from HBM and is cast to bf16 in-register; weights
    are bf16 MXU operands; biases, accumulation and ReLU are f32.
    """
    x = x_ref[...].astype(jnp.bfloat16)              # in-kernel cast (free VPU slot)
    h = jnp.dot(x, w0_ref[...], preferred_element_type=jnp.float32) + b0_ref[...]
    h = jnp.maximum(h, 0.0)
    h = jnp.dot(h.astype(jnp.bfloat16), w1_ref[...],
                preferred_element_type=jnp.float32) + b1_ref[...]
    h = jnp.maximum(h, 0.0)
    h = jnp.dot(h.astype(jnp.bfloat16), w2_ref[...],
                preferred_element_type=jnp.float32) + b2_ref[...]
    h = jnp.maximum(h, 0.0)
    y = jnp.dot(h.astype(jnp.bfloat16), w3_ref[...],
                preferred_element_type=jnp.float32) + b3_ref[...]
    o_ref[...] = y.astype(o_ref.dtype)               # unpadded (tm, out) store


@functools.partial(jax.jit, static_argnames=("tile_m",))
def compressor_forward(x, params, *, tile_m=4096):
    """x: (nbatch, nwindow, input_size) float32 -> (nbatch, nwindow, output_size) float32."""
    w0, b0, w1, b1, w2, b2, w3, b3 = params
    nbatch, nwindow = x.shape[:2]
    input_size, hidden_size = w0.shape
    output_size = w3.shape[1]
    # linear2 maps input_size -> hidden but is fed `hidden` features: the
    # original module only works when hidden_size == input_size.
    assert hidden_size == input_size, "Compressor.forward requires hidden_size == input_size"
    assert w2.shape == (input_size, hidden_size)

    x2d = x.reshape(nbatch * nwindow, input_size)     # f32, no pre-cast, no padding
    M = x2d.shape[0]

    # ---- row tiling: tall tiles, but keep >= 2 grid steps (v7x megacore) ----
    if M < 16:
        tm = M                                        # single full-extent tile
    else:
        tm = min(tile_m, _round_up(_cdiv(M, 2), 8))   # multiple of 8, >= 2 steps
    grid = (_cdiv(M, tm),)                            # ragged last tile is masked

    # ---- MXU weight operands in bf16 (tiny, resident in VMEM); biases f32 ----
    w0c = w0.astype(jnp.bfloat16)
    w1c = w1.astype(jnp.bfloat16)
    w2c = w2.astype(jnp.bfloat16)
    w3c = w3.astype(jnp.bfloat16)
    b0r = b0.reshape(1, -1).astype(jnp.float32)
    b1r = b1.reshape(1, -1).astype(jnp.float32)
    b2r = b2.reshape(1, -1).astype(jnp.float32)
    b3r = b3.reshape(1, -1).astype(jnp.float32)

    # Weights/biases: full-array blocks with constant index maps -> loaded
    # once and kept resident in VMEM across all grid steps.
    def const_spec(arr):
        return pl.BlockSpec(arr.shape, lambda i: (0, 0))

    in_specs = [
        pl.BlockSpec((tm, input_size), lambda i: (i, 0)),   # x row-tile (f32)
        const_spec(w0c), const_spec(b0r),
        const_spec(w1c), const_spec(b1r),
        const_spec(w2c), const_spec(b2r),
        const_spec(w3c), const_spec(b3r),
    ]
    out_specs = pl.BlockSpec((tm, output_size), lambda i: (i, 0))

    flops = 2 * M * (input_size * hidden_size
                     + 2 * hidden_size * hidden_size
                     + hidden_size * output_size)
    weight_bytes = sum(int(a.size) * a.dtype.itemsize
                       for a in (w0c, w1c, w2c, w3c, b0r, b1r, b2r, b3r))
    bytes_accessed = (M * input_size * 4          # f32 activations read
                      + M * output_size * 4       # f32 output write (unpadded)
                      + weight_bytes)

    out = pl.pallas_call(
        _mlp_kernel,
        out_shape=jax.ShapeDtypeStruct((M, output_size), jnp.float32),
        grid=grid,
        in_specs=in_specs,
        out_specs=out_specs,
        compiler_params=pltpu.CompilerParams(
            dimension_semantics=("parallel",),
            vmem_limit_bytes=32 * 1024 * 1024,
        ),
        cost_estimate=pl.CostEstimate(
            flops=int(flops), transcendentals=0, bytes_accessed=int(bytes_accessed)),
    )(x2d, w0c, b0r, w1c, b1r, w2c, b2r, w3c, b3r)

    return out.reshape(nbatch, nwindow, output_size)


def init_params(key, input_size, hidden_size, output_size):
    """Deterministic init mimicking nn.Linear's uniform(-1/sqrt(fan_in), 1/sqrt(fan_in)).
    Weights are stored as (in_features, out_features) (i.e. transposed vs. PyTorch)."""
    def linear(k, fan_in, fan_out):
        kw, kb = jax.random.split(k)
        bound = 1.0 / jnp.sqrt(float(fan_in))
        w = jax.random.uniform(kw, (fan_in, fan_out), jnp.float32, -bound, bound)
        b = jax.random.uniform(kb, (fan_out,), jnp.float32, -bound, bound)
        return w, b

    k0, k1, k2, k3 = jax.random.split(key, 4)
    w0, b0 = linear(k0, input_size, hidden_size)    # linear0
    w1, b1 = linear(k1, hidden_size, hidden_size)   # linear1
    w2, b2 = linear(k2, input_size, hidden_size)    # linear2 (requires hidden==input)
    w3, b3 = linear(k3, hidden_size, output_size)   # linear3
    return (w0, b0, w1, b1, w2, b2, w3, b3)


def _reference_forward(x, params, compute_dtype=jnp.float32):
    """Pure-JAX reference. With compute_dtype=bfloat16 it mirrors the kernel's
    precision policy (bf16 MXU operands, f32 accumulation/elementwise)."""
    w0, b0, w1, b1, w2, b2, w3, b3 = params
    nbatch, nwindow = x.shape[:2]
    h = x.reshape(nbatch * nwindow, -1)

    def layer(h, w, b, relu):
        y = jnp.dot(h.astype(compute_dtype), w.astype(compute_dtype),
                    preferred_element_type=jnp.float32) + b
        return jnp.maximum(y, 0.0) if relu else y

    h = layer(h, w0, b0, True)
    h = layer(h, w1, b1, True)
    h = layer(h, w2, b2, True)
    y = layer(h, w3, b3, False)
    return y.reshape(nbatch, nwindow, -1)


if __name__ == "__main__":
    # Small shapes: the module's forward only works when hidden_size == input_size.
    nbatch, nwindow = 2, 8
    input_size = 32
    hidden_size = 32
    output_size = 16

    key = jax.random.PRNGKey(0)
    kx, kp = jax.random.split(key)
    x = jax.random.normal(kx, (nbatch, nwindow, input_size), jnp.float32)
    params = init_params(kp, input_size, hidden_size, output_size)

    out = compressor_forward(x, params)
    out = jax.block_until_ready(out)
    assert out.shape == (nbatch, nwindow, output_size)
    assert out.dtype == jnp.float32

    # Exact-policy reference (bf16 MXU operands, f32 accumulation) -> tight check.
    ref_bf16 = _reference_forward(x, params, compute_dtype=jnp.bfloat16)
    assert jnp.allclose(out, ref_bf16, atol=1e-2, rtol=1e-2)

    # Full-f32 reference -> semantic sanity check with bf16-appropriate tolerance.
    ref_f32 = _reference_forward(x, params, compute_dtype=jnp.float32)
    assert jnp.allclose(out, ref_f32, atol=5e-2, rtol=5e-2)

    print("KERNEL_OK")
</pallas_src>

<mosaic_0001>
module attributes {stable_mosaic.version = 11 : i64} {
  func.func @_mlp_kernel(%arg0: i32, %arg1: memref<8x32xf32, #tpu.memory_space<vmem>>, %arg2: memref<32x32xbf16, #tpu.memory_space<vmem>>, %arg3: memref<1x32xf32, #tpu.memory_space<vmem>>, %arg4: memref<32x32xbf16, #tpu.memory_space<vmem>>, %arg5: memref<1x32xf32, #tpu.memory_space<vmem>>, %arg6: memref<32x32xbf16, #tpu.memory_space<vmem>>, %arg7: memref<1x32xf32, #tpu.memory_space<vmem>>, %arg8: memref<32x16xbf16, #tpu.memory_space<vmem>>, %arg9: memref<1x16xf32, #tpu.memory_space<vmem>>, %arg10: memref<8x16xf32, #tpu.memory_space<vmem>>) attributes {dimension_semantics = [#tpu.dimension_semantics<parallel>], iteration_bounds = array<i64: 2>, scalar_prefetch = 0 : i64, scratch_operands = 0 : i64, tpu.core_type = #tpu.core_type<tc>, window_params = [{transform_indices = @transform_0, window_bounds = array<i64: 8, 32>}, {pipeline_mode = #tpu.pipeline_mode<synchronous>, transform_indices = @transform_1, window_bounds = array<i64: 32, 32>}, {pipeline_mode = #tpu.pipeline_mode<synchronous>, transform_indices = @transform_2, window_bounds = array<i64: 1, 32>}, {pipeline_mode = #tpu.pipeline_mode<synchronous>, transform_indices = @transform_3, window_bounds = array<i64: 32, 32>}, {pipeline_mode = #tpu.pipeline_mode<synchronous>, transform_indices = @transform_4, window_bounds = array<i64: 1, 32>}, {pipeline_mode = #tpu.pipeline_mode<synchronous>, transform_indices = @transform_5, window_bounds = array<i64: 32, 32>}, {pipeline_mode = #tpu.pipeline_mode<synchronous>, transform_indices = @transform_6, window_bounds = array<i64: 1, 32>}, {pipeline_mode = #tpu.pipeline_mode<synchronous>, transform_indices = @transform_7, window_bounds = array<i64: 32, 16>}, {pipeline_mode = #tpu.pipeline_mode<synchronous>, transform_indices = @transform_8, window_bounds = array<i64: 1, 16>}, {transform_indices = @transform_9, window_bounds = array<i64: 8, 16>}]} {
    %c0 = arith.constant 0 : index
    %c0_0 = arith.constant 0 : index
    %0 = vector.load %arg1[%c0, %c0_0] : memref<8x32xf32, #tpu.memory_space<vmem>>, vector<8x32xf32>
    %1 = arith.truncf %0 : vector<8x32xf32> to vector<8x32xbf16>
    %c0_1 = arith.constant 0 : index
    %c0_2 = arith.constant 0 : index
    %2 = vector.load %arg2[%c0_1, %c0_2] : memref<32x32xbf16, #tpu.memory_space<vmem>>, vector<32x32xbf16>
    %cst = arith.constant dense<0.000000e+00> : vector<8x32xf32>
    %3 = tpu.matmul %1, %2, %cst {dimension_numbers = #tpu.dot_dimension_numbers<[1], [0], [0], [1], [0, 0, 1, 1], [], []>} : vector<8x32xbf16>, vector<32x32xbf16>, vector<8x32xf32> -> vector<8x32xf32>
    %c0_3 = arith.constant 0 : index
    %c0_4 = arith.constant 0 : index
    %4 = vector.load %arg3[%c0_3, %c0_4] : memref<1x32xf32, #tpu.memory_space<vmem>>, vector<1x32xf32>
    %5 = vector.broadcast %4 : vector<1x32xf32> to vector<8x32xf32>
    %6 = arith.addf %3, %5 : vector<8x32xf32>
    %cst_5 = arith.constant 0.000000e+00 : f32
    %7 = vector.broadcast %cst_5 : f32 to vector<8x32xf32>
    %8 = arith.maximumf %6, %7 : vector<8x32xf32>
    %9 = arith.truncf %8 : vector<8x32xf32> to vector<8x32xbf16>
    %c0_6 = arith.constant 0 : index
    %c0_7 = arith.constant 0 : index
    %10 = vector.load %arg4[%c0_6, %c0_7] : memref<32x32xbf16, #tpu.memory_space<vmem>>, vector<32x32xbf16>
    %cst_8 = arith.constant dense<0.000000e+00> : vector<8x32xf32>
    %11 = tpu.matmul %9, %10, %cst_8 {dimension_numbers = #tpu.dot_dimension_numbers<[1], [0], [0], [1], [0, 0, 1, 1], [], []>} : vector<8x32xbf16>, vector<32x32xbf16>, vector<8x32xf32> -> vector<8x32xf32>
    %c0_9 = arith.constant 0 : index
    %c0_10 = arith.constant 0 : index
    %12 = vector.load %arg5[%c0_9, %c0_10] : memref<1x32xf32, #tpu.memory_space<vmem>>, vector<1x32xf32>
    %13 = vector.broadcast %12 : vector<1x32xf32> to vector<8x32xf32>
    %14 = arith.addf %11, %13 : vector<8x32xf32>
    %cst_11 = arith.constant 0.000000e+00 : f32
    %15 = vector.broadcast %cst_11 : f32 to vector<8x32xf32>
    %16 = arith.maximumf %14, %15 : vector<8x32xf32>
    %17 = arith.truncf %16 : vector<8x32xf32> to vector<8x32xbf16>
    %c0_12 = arith.constant 0 : index
    %c0_13 = arith.constant 0 : index
    %18 = vector.load %arg6[%c0_12, %c0_13] : memref<32x32xbf16, #tpu.memory_space<vmem>>, vector<32x32xbf16>
    %cst_14 = arith.constant dense<0.000000e+00> : vector<8x32xf32>
    %19 = tpu.matmul %17, %18, %cst_14 {dimension_numbers = #tpu.dot_dimension_numbers<[1], [0], [0], [1], [0, 0, 1, 1], [], []>} : vector<8x32xbf16>, vector<32x32xbf16>, vector<8x32xf32> -> vector<8x32xf32>
    %c0_15 = arith.constant 0 : index
    %c0_16 = arith.constant 0 : index
    %20 = vector.load %arg7[%c0_15, %c0_16] : memref<1x32xf32, #tpu.memory_space<vmem>>, vector<1x32xf32>
    %21 = vector.broadcast %20 : vector<1x32xf32> to vector<8x32xf32>
    %22 = arith.addf %19, %21 : vector<8x32xf32>
    %cst_17 = arith.constant 0.000000e+00 : f32
    %23 = vector.broadcast %cst_17 : f32 to vector<8x32xf32>
    %24 = arith.maximumf %22, %23 : vector<8x32xf32>
    %25 = arith.truncf %24 : vector<8x32xf32> to vector<8x32xbf16>
    %c0_18 = arith.constant 0 : index
    %c0_19 = arith.constant 0 : index
    %26 = vector.load %arg8[%c0_18, %c0_19] : memref<32x16xbf16, #tpu.memory_space<vmem>>, vector<32x16xbf16>
    %cst_20 = arith.constant dense<0.000000e+00> : vector<8x16xf32>
    %27 = tpu.matmul %25, %26, %cst_20 {dimension_numbers = #tpu.dot_dimension_numbers<[1], [0], [0], [1], [0, 0, 1, 1], [], []>} : vector<8x32xbf16>, vector<32x16xbf16>, vector<8x16xf32> -> vector<8x16xf32>
    %c0_21 = arith.constant 0 : index
    %c0_22 = arith.constant 0 : index
    %28 = vector.load %arg9[%c0_21, %c0_22] : memref<1x16xf32, #tpu.memory_space<vmem>>, vector<1x16xf32>
    %29 = vector.broadcast %28 : vector<1x16xf32> to vector<8x16xf32>
    %30 = arith.addf %27, %29 : vector<8x16xf32>
    %c0_23 = arith.constant 0 : index
    %c0_24 = arith.constant 0 : index
    %31 = vector.load %arg10[%c0_23, %c0_24] : memref<8x16xf32, #tpu.memory_space<vmem>>, vector<8x16xf32>
    tpu.vector_store %arg10[%c0_23, %c0_24], %30 {strides = array<i32>} : memref<8x16xf32, #tpu.memory_space<vmem>>, vector<8x16xf32>,
    return
  }
  func.func @transform_0(%arg0: i32) -> (i32, i32) {
    %c0_i32 = arith.constant 0 : i32
    %c0_i32_0 = arith.constant 0 : i32
    return %arg0, %c0_i32 : i32, i32
  }
  func.func @transform_1(%arg0: i32) -> (i32, i32) {
    %c0_i32 = arith.constant 0 : i32
    %c0_i32_0 = arith.constant 0 : i32
    %c0_i32_1 = arith.constant 0 : i32
    return %c0_i32, %c0_i32_0 : i32, i32
  }
  func.func @transform_2(%arg0: i32) -> (i32, i32) {
    %c0_i32 = arith.constant 0 : i32
    %c0_i32_0 = arith.constant 0 : i32
    %c0_i32_1 = arith.constant 0 : i32
    return %c0_i32, %c0_i32_0 : i32, i32
  }
  func.func @transform_3(%arg0: i32) -> (i32, i32) {
    %c0_i32 = arith.constant 0 : i32
    %c0_i32_0 = arith.constant 0 : i32
    %c0_i32_1 = arith.constant 0 : i32
    return %c0_i32, %c0_i32_0 : i32, i32
  }
  func.func @transform_4(%arg0: i32) -> (i32, i32) {
    %c0_i32 = arith.constant 0 : i32
    %c0_i32_0 = arith.constant 0 : i32
    %c0_i32_1 = arith.constant 0 : i32
    return %c0_i32, %c0_i32_0 : i32, i32
  }
  func.func @transform_5(%arg0: i32) -> (i32, i32) {
    %c0_i32 = arith.constant 0 : i32
    %c0_i32_0 = arith.constant 0 : i32
    %c0_i32_1 = arith.constant 0 : i32
    return %c0_i32, %c0_i32_0 : i32, i32
  }
  func.func @transform_6(%arg0: i32) -> (i32, i32) {
    %c0_i32 = arith.constant 0 : i32
    %c0_i32_0 = arith.constant 0 : i32
    %c0_i32_1 = arith.constant 0 : i32
    return %c0_i32, %c0_i32_0 : i32, i32
  }
  func.func @transform_7(%arg0: i32) -> (i32, i32) {
    %c0_i32 = arith.constant 0 : i32
    %c0_i32_0 = arith.constant 0 : i32
    %c0_i32_1 = arith.constant 0 : i32
    return %c0_i32, %c0_i32_0 : i32, i32
  }
  func.func @transform_8(%arg0: i32) -> (i32, i32) {
    %c0_i32 = arith.constant 0 : i32
    %c0_i32_0 = arith.constant 0 : i32
    %c0_i32_1 = arith.constant 0 : i32
    return %c0_i32, %c0_i32_0 : i32, i32
  }
  func.func @transform_9(%arg0: i32) -> (i32, i32) {
    %c0_i32 = arith.constant 0 : i32
    %c0_i32_0 = arith.constant 0 : i32
    return %arg0, %c0_i32 : i32, i32
  }
}

</mosaic_0001>

<llo_original>
// kernel: compressor_forward.1
$region0: #{compressor_forward.1}
  #allocation0 [shape = 'u32[]', space=smem, size = 0x4, offset = 0x4, fixed_abs, tag = 'smem constant byte address 0x4 - core index']
  #allocation1 [shape = 'u32[144,128]{1,0:T(1,128)}', space=vmem, size = 0x12000, scoped, tag = 'internal scratch']
  %s0 = inlined_call_operand.vmem [shape: f32[16,32], index: 0, kind: input, shape index: {}]
  %s1 = inlined_call_operand.vmem [shape: bf16[32,32], index: 1, kind: input, shape index: {}]
  %s2 = inlined_call_operand.vmem [shape: f32[1,32], index: 2, kind: input, shape index: {}]
  %s3 = inlined_call_operand.vmem [shape: bf16[32,32], index: 3, kind: input, shape index: {}]
  %s4 = inlined_call_operand.vmem [shape: f32[1,32], index: 4, kind: input, shape index: {}]
  %s5 = inlined_call_operand.vmem [shape: bf16[32,32], index: 5, kind: input, shape index: {}]
  %s6 = inlined_call_operand.vmem [shape: f32[1,32], index: 6, kind: input, shape index: {}]
  %s7 = inlined_call_operand.vmem [shape: bf16[32,16], index: 7, kind: input, shape index: {}]
  %s8 = inlined_call_operand.vmem [shape: f32[1,16], index: 8, kind: input, shape index: {}]
  %s9 = inlined_call_operand.hbm [shape: f32[16,16], index: 9, kind: output, shape index: {}]
  %s10 = sld [smem:[#allocation0]]
  $region69: #{compressor_forward.1} parent=0
    _
  %s12 = ssub.s32 1, %s10
  %s13 = scalar_select 0, %s12, %s10
  $region1: #{compressor_forward.1} parent=0
    #allocation2 [shape = 'u8[8192]{0}', space=vmem, size = 0x2000, scoped, tag = 'output window, operand 0']
    #allocation3 [shape = 's32[2]{0}', space=sflag, size = 0x8, scoped, tag = 'scoped memory for compressor_forward.1']
    %14 = vsyncpa [#allocation3], 0
    %s15 = scalar_lea.sflag [#allocation3], 1
    %16 = vsyncpa %s15, 0
    loop: start=0, step=1, limit=4
    $region2: #{compressor_forward.1} parent=1 // loop_pre_header
      _
    $region3: #{compressor_forward.1} parent=1 // loop_header
      %s18 = sphi 0, %s22
      %p19 = scmp.ge.s32.totalorder %s18, 4
      %s28 = sphi 0, %s30
      %s31 = sphi 0, %s28
      %s32 = sphi 0, %s31
      %s48 = sphi 0, %s32
      %s52 = sphi 0, %s52
      %s54 = sphi 0, %s52
      %s55 = sphi 0, %s54
      %s69 = sphi 0, %s55
      %s73 = sphi 0, %s73
      %s75 = sphi 0, %s73
      %s76 = sphi 0, %s75
      %s90 = sphi 0, %s76
      %s94 = sphi 0, %s94
      %s96 = sphi 0, %s94
      %s97 = sphi 0, %s96
      %s111 = sphi 0, %s97
      %s115 = sphi 0, %s115
      %s117 = sphi 0, %s115
      %s118 = sphi 0, %s117
      %s132 = sphi 0, %s118
      %s136 = sphi 0, %s136
      %s138 = sphi 0, %s136
      %s139 = sphi 0, %s138
      %s153 = sphi 0, %s139
      %s157 = sphi 0, %s157
      %s159 = sphi 0, %s157
      %s160 = sphi 0, %s159
      %s174 = sphi 0, %s160
      %s178 = sphi 0, %s178
      %s180 = sphi 0, %s178
      %s181 = sphi 0, %s180
      %s195 = sphi 0, %s181
      %s199 = sphi 0, %s199
      %s201 = sphi 0, %s199
      %s202 = sphi 0, %s201
      %s216 = sphi 0, %s202
      %s222 = sphi 0, %s224
      %s225 = sphi 0, %s222
      %s226 = sphi 0, %s225
      %s242 = sphi 0, %s226
    $region4: #{compressor_forward.1} parent=1 // loop_header_branch
      %21 = sbr.rel (%p19) target = $region8
    $region5: #{compressor_forward.1} parent=1 // loop_body
      %s23 = ssub.s32 %s18, 1
      %s24 = ssub.s32 %s18, 2
      %s25 = sadd.s32 %s18, 1
      %s26 = ssub.s32 %s18, %s25
      %p27 = scmp.eq.s32.totalorder %s26, 0
      %s29 = sadd.s32 %s28, 1
      %s30 = scalar_select %p27, %s28, %s29
      %p33 = pneg %p27
      %p34 = scmp.eq.s32.totalorder %s18, 1
      %p35 = por %p33, %p34
      %p36 = scmp.ne.s32.totalorder %s28, %s31
      %p37 = scmp.eq.s32.totalorder %s18, 0
      %p38 = por %p36, %p37
      %p39 = scmp.ne.s32.totalorder %s28, %s31
      %p40 = scmp.eq.s32.totalorder %s23, 1
      %p41 = por %p39, %p40
      %p42 = scmp.ne.s32.totalorder %s31, %s32
      %p43 = scmp.eq.s32.totalorder %s23, 0
      %p44 = por %p42, %p43
      %p45 = scmp.ne.s32.totalorder %s31, %s32
      %p46 = scmp.eq.s32.totalorder %s24, 1
      %p47 = por %p45, %p46
      %p49 = scmp.ne.s32.totalorder %s32, %s48
      %p50 = scmp.eq.s32.totalorder %s24, 0
      %p51 = por %p49, %p50
      %s53 = sadd.s32 %s52, 1
      %p56 = scmp.eq.s32.totalorder %s18, 1
      %p57 = scmp.ne.s32.totalorder %s52, %s54
      %p58 = scmp.eq.s32.totalorder %s18, 0
      %p59 = por %p57, %p58
      %p60 = scmp.ne.s32.totalorder %s52, %s54
      %p61 = scmp.eq.s32.totalorder %s23, 1
      %p62 = por %p60, %p61
      %p63 = scmp.ne.s32.totalorder %s54, %s55
      %p64 = scmp.eq.s32.totalorder %s23, 0
      %p65 = por %p63, %p64
      %p66 = scmp.ne.s32.totalorder %s54, %s55
      %p67 = scmp.eq.s32.totalorder %s24, 1
      %p68 = por %p66, %p67
      %p70 = scmp.ne.s32.totalorder %s55, %s69
      %p71 = scmp.eq.s32.totalorder %s24, 0
      %p72 = por %p70, %p71
      %s74 = sadd.s32 %s73, 1
      %p77 = scmp.eq.s32.totalorder %s18, 1
      %p78 = scmp.ne.s32.totalorder %s73, %s75
      %p79 = scmp.eq.s32.totalorder %s18, 0
      %p80 = por %p78, %p79
      %p81 = scmp.ne.s32.totalorder %s73, %s75
      %p82 = scmp.eq.s32.totalorder %s23, 1
      %p83 = por %p81, %p82
      %p84 = scmp.ne.s32.totalorder %s75, %s76
      %p85 = scmp.eq.s32.totalorder %s23, 0
      %p86 = por %p84, %p85
      %p87 = scmp.ne.s32.totalorder %s75, %s76
      %p88 = scmp.eq.s32.totalorder %s24, 1
      %p89 = por %p87, %p88
      %p91 = scmp.ne.s32.totalorder %s76, %s90
      %p92 = scmp.eq.s32.totalorder %s24, 0
      %p93 = por %p91, %p92
      %s95 = sadd.s32 %s94, 1
      %p98 = scmp.eq.s32.totalorder %s18, 1
      %p99 = scmp.ne.s32.totalorder %s94, %s96
      %p100 = scmp.eq.s32.totalorder %s18, 0
      %p101 = por %p99, %p100
      %p102 = scmp.ne.s32.totalorder %s94, %s96
      %p103 = scmp.eq.s32.totalorder %s23, 1
      %p104 = por %p102, %p103
      %p105 = scmp.ne.s32.totalorder %s96, %s97
      %p106 = scmp.eq.s32.totalorder %s23, 0
      %p107 = por %p105, %p106
      %p108 = scmp.ne.s32.totalorder %s96, %s97
      %p109 = scmp.eq.s32.totalorder %s24, 1
      %p110 = por %p108, %p109
      %p112 = scmp.ne.s32.totalorder %s97, %s111
      %p113 = scmp.eq.s32.totalorder %s24, 0
      %p114 = por %p112, %p113
      %s116 = sadd.s32 %s115, 1
      %p119 = scmp.eq.s32.totalorder %s18, 1
      %p120 = scmp.ne.s32.totalorder %s115, %s117
      %p121 = scmp.eq.s32.totalorder %s18, 0
      %p122 = por %p120, %p121
      %p123 = scmp.ne.s32.totalorder %s115, %s117
      %p124 = scmp.eq.s32.totalorder %s23, 1
      %p125 = por %p123, %p124
      %p126 = scmp.ne.s32.totalorder %s117, %s118
      %p127 = scmp.eq.s32.totalorder %s23, 0
      %p128 = por %p126, %p127
      %p129 = scmp.ne.s32.totalorder %s117, %s118
      %p130 = scmp.eq.s32.totalorder %s24, 1
      %p131 = por %p129, %p130
      %p133 = scmp.ne.s32.totalorder %s118, %s132
      %p134 = scmp.eq.s32.totalorder %s24, 0
      %p135 = por %p133, %p134
      %s137 = sadd.s32 %s136, 1
      %p140 = scmp.eq.s32.totalorder %s18, 1
      %p141 = scmp.ne.s32.totalorder %s136, %s138
      %p142 = scmp.eq.s32.totalorder %s18, 0
      %p143 = por %p141, %p142
      %p144 = scmp.ne.s32.totalorder %s136, %s138
      %p145 = scmp.eq.s32.totalorder %s23, 1
      %p146 = por %p144, %p145
      %p147 = scmp.ne.s32.totalorder %s138, %s139
      %p148 = scmp.eq.s32.totalorder %s23, 0
      %p149 = por %p147, %p148
      %p150 = scmp.ne.s32.totalorder %s138, %s139
      %p151 = scmp.eq.s32.totalorder %s24, 1
      %p152 = por %p150, %p151
      %p154 = scmp.ne.s32.totalorder %s139, %s153
      %p155 = scmp.eq.s32.totalorder %s24, 0
      %p156 = por %p154, %p155
      %s158 = sadd.s32 %s157, 1
      %p161 = scmp.eq.s32.totalorder %s18, 1
      %p162 = scmp.ne.s32.totalorder %s157, %s159
      %p163 = scmp.eq.s32.totalorder %s18, 0
      %p164 = por %p162, %p163
      %p165 = scmp.ne.s32.totalorder %s157, %s159
      %p166 = scmp.eq.s32.totalorder %s23, 1
      %p167 = por %p165, %p166
      %p168 = scmp.ne.s32.totalorder %s159, %s160
      %p169 = scmp.eq.s32.totalorder %s23, 0
      %p170 = por %p168, %p169
      %p171 = scmp.ne.s32.totalorder %s159, %s160
      %p172 = scmp.eq.s32.totalorder %s24, 1
      %p173 = por %p171, %p172
      %p175 = scmp.ne.s32.totalorder %s160, %s174
      %p176 = scmp.eq.s32.totalorder %s24, 0
      %p177 = por %p175, %p176
      %s179 = sadd.s32 %s178, 1
      %p182 = scmp.eq.s32.totalorder %s18, 1
      %p183 = scmp.ne.s32.totalorder %s178, %s180
      %p184 = scmp.eq.s32.totalorder %s18, 0
      %p185 = por %p183, %p184
      %p186 = scmp.ne.s32.totalorder %s178, %s180
      %p187 = scmp.eq.s32.totalorder %s23, 1
      %p188 = por %p186, %p187
      %p189 = scmp.ne.s32.totalorder %s180, %s181
      %p190 = scmp.eq.s32.totalorder %s23, 0
      %p191 = por %p189, %p190
      %p192 = scmp.ne.s32.totalorder %s180, %s181
      %p193 = scmp.eq.s32.totalorder %s24, 1
      %p194 = por %p192, %p193
      %p196 = scmp.ne.s32.totalorder %s181, %s195
      %p197 = scmp.eq.s32.totalorder %s24, 0
      %p198 = por %p196, %p197
      %s200 = sadd.s32 %s199, 1
      %p203 = scmp.eq.s32.totalorder %s18, 1
      %p204 = scmp.ne.s32.totalorder %s199, %s201
      %p205 = scmp.eq.s32.totalorder %s18, 0
      %p206 = por %p204, %p205
      %p207 = scmp.ne.s32.totalorder %s199, %s201
      %p208 = scmp.eq.s32.totalorder %s23, 1
      %p209 = por %p207, %p208
      %p210 = scmp.ne.s32.totalorder %s201, %s202
      %p211 = scmp.eq.s32.totalorder %s23, 0
      %p212 = por %p210, %p211
      %p213 = scmp.ne.s32.totalorder %s201, %s202
      %p214 = scmp.eq.s32.totalorder %s24, 1
      %p215 = por %p213, %p214
      %p217 = scmp.ne.s32.totalorder %s202, %s216
      %p218 = scmp.eq.s32.totalorder %s24, 0
      %p219 = por %p217, %p218
      %s220 = ssub.s32 %s18, %s25
      %p221 = scmp.eq.s32.totalorder %s220, 0
      %s223 = sadd.s32 %s222, 1
      %s224 = scalar_select %p221, %s222, %s223
      %p227 = pneg %p221
      %p228 = scmp.eq.s32.totalorder %s18, 1
      %p229 = por %p227, %p228
      %p230 = scmp.ne.s32.totalorder %s222, %s225
      %p231 = scmp.eq.s32.totalorder %s18, 0
      %p232 = por %p230, %p231
      %p233 = scmp.ne.s32.totalorder %s222, %s225
      %p234 = scmp.eq.s32.totalorder %s23, 1
      %p235 = por %p233, %p234
      %p236 = scmp.ne.s32.totalorder %s225, %s226
      %p237 = scmp.eq.s32.totalorder %s23, 0
      %p238 = por %p236, %p237
      %p239 = scmp.ne.s32.totalorder %s225, %s226
      %p240 = scmp.eq.s32.totalorder %s24, 1
      %p241 = por %p239, %p240
      %p243 = scmp.ne.s32.totalorder %s226, %s242
      %p244 = scmp.eq.s32.totalorder %s24, 0
      %p245 = por %p243, %p244
      %p246 = scmp.le.s32.totalorder 1, %s18
      %p247 = scmp.lt.s32.totalorder %s18, 3
      %p248 = pnand %p246, %p247
      %p249 = pneg %p248
      // Predicated region
      $region9: #{compressor_forward.1} parent=5 // pred_check
        _
      $region10: #{compressor_forward.1} parent=5 // pred_check_branch
        %251 = sbr.rel (%p248) target = $region12
      $region11: #{compressor_forward.1} parent=5 // pred_region
        %s252 = ssub.s32 %s18, 1
        // Predicated region
        $region13: #{compressor_forward.1} parent=11 // pred_check
          %p253 = pneg %p65
        $region14: #{compressor_forward.1} parent=11 // pred_check_branch
          %255 = sbr.rel (%p253) target = $region16
        $region15: #{compressor_forward.1} parent=11 // pred_region
          _
        $region16: #{compressor_forward.1} parent=11 // pred_fallthru
          _
        // Predicated region
        $region17: #{compressor_forward.1} parent=11 // pred_check
          %p256 = pneg %p86
        $region18: #{compressor_forward.1} parent=11 // pred_check_branch
          %258 = sbr.rel (%p256) target = $region20
        $region19: #{compressor_forward.1} parent=11 // pred_region
          _
        $region20: #{compressor_forward.1} parent=11 // pred_fallthru
          _
        // Predicated region
        $region21: #{compressor_forward.1} parent=11 // pred_check
          %p259 = pneg %p107
        $region22: #{compressor_forward.1} parent=11 // pred_check_branch
          %261 = sbr.rel (%p259) target = $region24
        $region23: #{compressor_forward.1} parent=11 // pred_region
          _
        $region24: #{compressor_forward.1} parent=11 // pred_fallthru
          _
        // Predicated region
        $region25: #{compressor_forward.1} parent=11 // pred_check
          %p262 = pneg %p128
        $region26: #{compressor_forward.1} parent=11 // pred_check_branch
          %264 = sbr.rel (%p262) target = $region28
        $region27: #{compressor_forward.1} parent=11 // pred_region
          _
        $region28: #{compressor_forward.1} parent=11 // pred_fallthru
          _
        // Predicated region
        $region29: #{compressor_forward.1} parent=11 // pred_check
          %p265 = pneg %p149
        $region30: #{compressor_forward.1} parent=11 // pred_check_branch
          %267 = sbr.rel (%p265) target = $region32
        $region31: #{compressor_forward.1} parent=11 // pred_region
          _
        $region32: #{compressor_forward.1} parent=11 // pred_fallthru
          _
        // Predicated region
        $region33: #{compressor_forward.1} parent=11 // pred_check
          %p268 = pneg %p170
        $region34: #{compressor_forward.1} parent=11 // pred_check_branch
          %270 = sbr.rel (%p268) target = $region36
        $region35: #{compressor_forward.1} parent=11 // pred_region
          _
        $region36: #{compressor_forward.1} parent=11 // pred_fallthru
          _
        // Predicated region
        $region37: #{compressor_forward.1} parent=11 // pred_check
          %p271 = pneg %p191
        $region38: #{compressor_forward.1} parent=11 // pred_check_branch
          %273 = sbr.rel (%p271) target = $region40
        $region39: #{compressor_forward.1} parent=11 // pred_region
          _
        $region40: #{compressor_forward.1} parent=11 // pred_fallthru
          _
        // Predicated region
        $region41: #{compressor_forward.1} parent=11 // pred_check
          %p274 = pneg %p212
        $region42: #{compressor_forward.1} parent=11 // pred_check_branch
          %276 = sbr.rel (%p274) target = $region44
        $region43: #{compressor_forward.1} parent=11 // pred_region
          _
        $region44: #{compressor_forward.1} parent=11 // pred_fallthru
          _
      $region12: #{compressor_forward.1} parent=5 // pred_fallthru
        _
      %p277 = scmp.lt.s32.totalorder %s18, 2
      // Predicated region
      $region45: #{compressor_forward.1} parent=5 // pred_check
        %p278 = pneg %p277
      $region46: #{compressor_forward.1} parent=5 // pred_check_branch
        %280 = sbr.rel (%p278) target = $region48
      $region47: #{compressor_forward.1} parent=5 // pred_region
        // Predicated region
        $region49: #{compressor_forward.1} parent=47 // pred_check
          %p281 = pneg %p38
        $region50: #{compressor_forward.1} parent=47 // pred_check_branch
          %283 = sbr.rel (%p281) target = $region52
        $region51: #{compressor_forward.1} parent=47 // pred_region
          %p284 = scmp.lt.s32.totalorder %s18, 1
          %s285 = scalar_select %p284, %s18, 1
          %s286 = smul.addr %s285, 8
          %s287 = scalar_lea.vmem %s0, %s286
        $region52: #{compressor_forward.1} parent=47 // pred_fallthru
          _
      $region48: #{compressor_forward.1} parent=5 // pred_fallthru
        _
      %p288 = scmp.le.s32.totalorder 1, %s18
      %p289 = scmp.lt.s32.totalorder %s18, 3
      %p290 = pnand %p288, %p289
      %p291 = pneg %p290
      // Predicated region
      $region53: #{compressor_forward.1} parent=5 // pred_check
        _
      $region54: #{compressor_forward.1} parent=5 // pred_check_branch
        %293 = sbr.rel (%p290) target = $region56
      $region55: #{compressor_forward.1} parent=5 // pred_region
        %s294 = ssub.s32 %s18, 1
        %p295 = scmp.lt.s32.totalorder %s23, 1
        %s296 = scalar_select %p295, %s23, 1
        %s297 = smul.addr %s296, 8
        %s298 = scalar_lea.vmem %s0, %s297
        %p299 = pneg %p44
        %p300 = pneg %p41
        %p301 = pneg %p65
        %p302 = pneg %p62
        %p303 = pneg %p86
        %p304 = pneg %p83
        %p305 = pneg %p107
        %p306 = pneg %p104
        %p307 = pneg %p128
        %p308 = pneg %p125
        %p309 = pneg %p149
        %p310 = pneg %p146
        %p311 = pneg %p170
        %p312 = pneg %p167
        %p313 = pneg %p191
        %p314 = pneg %p188
        %p315 = pneg %p212
        %p316 = pneg %p209
        %p317 = pneg %p238
        %p318 = pneg %p235
        %s319 = sand.u32 %s225, 1
        %s320 = scalar_lea.sflag [#allocation3], %s319
        %s321 = sand.u32 %s225, 1
        %s322 = smul.addr %s321, 8
        %s323 = scalar_lea.vmem [#allocation2], %s322
        %p324 = scmp.lt.s32.totalorder %s23, 1
        %s325 = scalar_select %p324, %s23, 1
        %s326 = smul.addr %s325, 8
        %s327 = scalar_lea.vmem %s0, %s326
        %v329 = vld [vmem:[%s327] sm:$0xff]
        %v330 = vpack.c.bf16 %v329, %v329
        %v331 = vld [vmem:[%s1] sm:$0xf]
        %v332 = vld [vmem:[%s1 + $0x4] sm:$0xf]
        %v333 = vld [vmem:[%s1 + $0x8] sm:$0xf]
        %v334 = vld [vmem:[%s1 + $0xc] sm:$0xf]
        %v335 = vld [vmem:[%s2] sm:$0x1]
        %v337 = vlaneseq
        %v338 = vshrl.u32 %v337, 7
        %v339 = vsub.s32 0, %v338
        %v340 = vrot.slane %v335, %v339
        %v346 = vunpack.c.l.b16 %v331
        %v347 = vunpack.c.l.b16 %v332
        %v348 = vunpack.c.l.b16 %v333
        %v349 = vunpack.c.l.b16 %v334
        %v350 = vpack.c.b16 %v347, %v346
        %v351 = vpack.c.b16 %v349, %v348
        %vm354 = vcmask 261120
        %v356 = vsel %vm354, %v330, 0
        %358 = vmatprep.subr.bf16.mxu0 0
        %359 = vmatpush1.bf16.msra.mxu0 %v350
        %360 = vmatprep.subr.bf16.mxu0 0
        %361 = vmatpush1.bf16.msra.mxu0 %v351
        %362 = vmatprep.subr.bf16.mxu0 0
        %363 = vmatpush1.bf16.msra.mxu0 0
        %364 = vmatprep.subr.bf16.mxu0 0
        %365 = vmatpush1.bf16.msra.mxu0 0
        %366 = vmatprep.subr.bf16.mxu0 0
        %367 = vmatpush1.bf16.msra.mxu0 0
        %368 = vmatprep.subr.bf16.mxu0 0
        %369 = vmatpush1.bf16.msra.mxu0 0
        %370 = vmatprep.subr.bf16.mxu0 0
        %371 = vmatpush1.bf16.msra.mxu0 0
        %372 = vmatprep.subr.bf16.mxu0 0
        %373 = vmatpush1.bf16.msra.mxu0 0
        %374 = vmatprep.subr.bf16.mxu0 0
        %375 = vmatpush1.bf16.msra.mxu0 0
        %376 = vmatprep.subr.bf16.mxu0 0
        %377 = vmatpush1.bf16.msra.mxu0 0
        %378 = vmatprep.subr.bf16.mxu0 0
        %379 = vmatpush1.bf16.msra.mxu0 0
        %380 = vmatprep.subr.bf16.mxu0 0
        %381 = vmatpush1.bf16.msra.mxu0 0
        %382 = vmatprep.subr.bf16.mxu0 0
        %383 = vmatpush1.bf16.msra.mxu0 0
        %384 = vmatprep.subr.bf16.mxu0 0
        %385 = vmatpush1.bf16.msra.mxu0 0
        %386 = vmatprep.subr.bf16.mxu0 0
        %387 = vmatpush1.bf16.msra.mxu0 0
        %388 = vmatprep.subr.bf16.mxu0 0
        %389 = vmatpush1.bf16.msra.mxu0 0
        %390 = vmatprep.mubr.bf16.mxu0 0
        %391 = vmatmul.mubr.bf16.gmra.mrb[0].mxu0 %v356
        %v392 = vpop.f32.mrb[0].mxu0
        %v393 = vadd.f32 %v340, %v392
        %v394 = vpop.f32.mrb[0].mxu0
        %v395 = vpop.f32.mrb[0].mxu0
        %v396 = vpop.f32.mrb[0].mxu0
        %397 = vdwg.mxu0
        %v398 = vmax.f32 %v393, 0.0
        %v399 = vpack.c.bf16 %v398, %v398
        %v400 = vld [vmem:[%s3] sm:$0xf]
        %v401 = vld [vmem:[%s3 + $0x4] sm:$0xf]
        %v402 = vld [vmem:[%s3 + $0x8] sm:$0xf]
        %v403 = vld [vmem:[%s3 + $0xc] sm:$0xf]
        %v404 = vld [vmem:[%s4] sm:$0x1]
        %v406 = vlaneseq
        %v407 = vshrl.u32 %v406, 7
        %v408 = vsub.s32 0, %v407
        %v409 = vrot.slane %v404, %v408
        %v415 = vunpack.c.l.b16 %v400
        %v416 = vunpack.c.l.b16 %v401
        %v417 = vunpack.c.l.b16 %v402
        %v418 = vunpack.c.l.b16 %v403
        %v419 = vpack.c.b16 %v416, %v415
        %v420 = vpack.c.b16 %v418, %v417
        %v424 = vsel %vm354, %v399, 0
        %426 = vmatprep.subr.bf16.mxu0 0
        %427 = vmatpush1.bf16.msra.mxu0 %v419
        %428 = vmatprep.subr.bf16.mxu0 0
        %429 = vmatpush1.bf16.msra.mxu0 %v420
        %430 = vmatprep.subr.bf16.mxu0 0
        %431 = vmatpush1.bf16.msra.mxu0 0
        %432 = vmatprep.subr.bf16.mxu0 0
        %433 = vmatpush1.bf16.msra.mxu0 0
        %434 = vmatprep.subr.bf16.mxu0 0
        %435 = vmatpush1.bf16.msra.mxu0 0
        %436 = vmatprep.subr.bf16.mxu0 0
        %437 = vmatpush1.bf16.msra.mxu0 0
        %438 = vmatprep.subr.bf16.mxu0 0
        %439 = vmatpush1.bf16.msra.mxu0 0
        %440 = vmatprep.subr.bf16.mxu0 0
        %441 = vmatpush1.bf16.msra.mxu0 0
        %442 = vmatprep.subr.bf16.mxu0 0
        %443 = vmatpush1.bf16.msra.mxu0 0
        %444 = vmatprep.subr.bf16.mxu0 0
        %445 = vmatpush1.bf16.msra.mxu0 0
        %446 = vmatprep.subr.bf16.mxu0 0
        %447 = vmatpush1.bf16.msra.mxu0 0
        %448 = vmatprep.subr.bf16.mxu0 0
        %449 = vmatpush1.bf16.msra.mxu0 0
        %450 = vmatprep.subr.bf16.mxu0 0
        %451 = vmatpush1.bf16.msra.mxu0 0
        %452 = vmatprep.subr.bf16.mxu0 0
        %453 = vmatpush1.bf16.msra.mxu0 0
        %454 = vmatprep.subr.bf16.mxu0 0
        %455 = vmatpush1.bf16.msra.mxu0 0
        %456 = vmatprep.subr.bf16.mxu0 0
        %457 = vmatpush1.bf16.msra.mxu0 0
        %458 = vmatprep.mubr.bf16.mxu0 0
        %459 = vmatmul.mubr.bf16.gmra.mrb[0].mxu0 %v424
        %v460 = vpop.f32.mrb[0].mxu0
        %v461 = vadd.f32 %v409, %v460
        %v462 = vpop.f32.mrb[0].mxu0
        %v463 = vpop.f32.mrb[0].mxu0
        %v464 = vpop.f32.mrb[0].mxu0
        %465 = vdwg.mxu0
        %v466 = vmax.f32 %v461, 0.0
        %v467 = vpack.c.bf16 %v466, %v466
        %v468 = vld [vmem:[%s5] sm:$0xf]
        %v469 = vld [vmem:[%s5 + $0x4] sm:$0xf]
        %v470 = vld [vmem:[%s5 + $0x8] sm:$0xf]
        %v471 = vld [vmem:[%s5 + $0xc] sm:$0xf]
        %v472 = vld [vmem:[%s6] sm:$0x1]
        %v474 = vlaneseq
        %v475 = vshrl.u32 %v474, 7
        %v476 = vsub.s32 0, %v475
        %v477 = vrot.slane %v472, %v476
        %v483 = vunpack.c.l.b16 %v468
        %v484 = vunpack.c.l.b16 %v469
        %v485 = vunpack.c.l.b16 %v470
        %v486 = vunpack.c.l.b16 %v471
        %v487 = vpack.c.b16 %v484, %v483
        %v488 = vpack.c.b16 %v486, %v485
        %v492 = vsel %vm354, %v467, 0
        %494 = vmatprep.subr.bf16.mxu0 0
        %495 = vmatpush1.bf16.msra.mxu0 %v487
        %496 = vmatprep.subr.bf16.mxu0 0
        %497 = vmatpush1.bf16.msra.mxu0 %v488
        %498 = vmatprep.subr.bf16.mxu0 0
        %499 = vmatpush1.bf16.msra.mxu0 0
        %500 = vmatprep.subr.bf16.mxu0 0
        %501 = vmatpush1.bf16.msra.mxu0 0
        %502 = vmatprep.subr.bf16.mxu0 0
        %503 = vmatpush1.bf16.msra.mxu0 0
        %504 = vmatprep.subr.bf16.mxu0 0
        %505 = vmatpush1.bf16.msra.mxu0 0
        %506 = vmatprep.subr.bf16.mxu0 0
        %507 = vmatpush1.bf16.msra.mxu0 0
        %508 = vmatprep.subr.bf16.mxu0 0
        %509 = vmatpush1.bf16.msra.mxu0 0
        %510 = vmatprep.subr.bf16.mxu0 0
        %511 = vmatpush1.bf16.msra.mxu0 0
        %512 = vmatprep.subr.bf16.mxu0 0
        %513 = vmatpush1.bf16.msra.mxu0 0
        %514 = vmatprep.subr.bf16.mxu0 0
        %515 = vmatpush1.bf16.msra.mxu0 0
        %516 = vmatprep.subr.bf16.mxu0 0
        %517 = vmatpush1.bf16.msra.mxu0 0
        %518 = vmatprep.subr.bf16.mxu0 0
        %519 = vmatpush1.bf16.msra.mxu0 0
        %520 = vmatprep.subr.bf16.mxu0 0
        %521 = vmatpush1.bf16.msra.mxu0 0
        %522 = vmatprep.subr.bf16.mxu0 0
        %523 = vmatpush1.bf16.msra.mxu0 0
        %524 = vmatprep.subr.bf16.mxu0 0
        %525 = vmatpush1.bf16.msra.mxu0 0
        %526 = vmatprep.mubr.bf16.mxu0 0
        %527 = vmatmul.mubr.bf16.gmra.mrb[0].mxu0 %v492
        %v528 = vpop.f32.mrb[0].mxu0
        %v529 = vadd.f32 %v477, %v528
        %v530 = vpop.f32.mrb[0].mxu0
        %v531 = vpop.f32.mrb[0].mxu0
        %v532 = vpop.f32.mrb[0].mxu0
        %533 = vdwg.mxu0
        %v534 = vmax.f32 %v529, 0.0
        %v535 = vpack.c.bf16 %v534, %v534
        %v536 = vld [vmem:[%s7] sm:$0xf]
        %v537 = vld [vmem:[%s7 + $0x4] sm:$0xf]
        %v538 = vld [vmem:[%s7 + $0x8] sm:$0xf]
        %v539 = vld [vmem:[%s7 + $0xc] sm:$0xf]
        %v540 = vld [vmem:[%s8] sm:$0x1]
        %v542 = vlaneseq
        %v543 = vshrl.u32 %v542, 7
        %v544 = vsub.s32 0, %v543
        %v545 = vrot.slane %v540, %v544
        %v551 = vunpack.c.l.b16 %v536
        %v552 = vunpack.c.l.b16 %v537
        %v553 = vunpack.c.l.b16 %v538
        %v554 = vunpack.c.l.b16 %v539
        %v555 = vpack.c.b16 %v552, %v551
        %v556 = vpack.c.b16 %v554, %v553
        %v560 = vsel %vm354, %v535, 0
        %562 = vmatprep.subr.bf16.mxu0 0
        %563 = vmatpush1.bf16.msra.mxu0 %v555
        %564 = vmatprep.subr.bf16.mxu0 0
        %565 = vmatpush1.bf16.msra.mxu0 %v556
        %566 = vmatprep.subr.bf16.mxu0 0
        %567 = vmatpush1.bf16.msra.mxu0 0
        %568 = vmatprep.subr.bf16.mxu0 0
        %569 = vmatpush1.bf16.msra.mxu0 0
        %570 = vmatprep.subr.bf16.mxu0 0
        %571 = vmatpush1.bf16.msra.mxu0 0
        %572 = vmatprep.subr.bf16.mxu0 0
        %573 = vmatpush1.bf16.msra.mxu0 0
        %574 = vmatprep.subr.bf16.mxu0 0
        %575 = vmatpush1.bf16.msra.mxu0 0
        %576 = vmatprep.subr.bf16.mxu0 0
        %577 = vmatpush1.bf16.msra.mxu0 0
        %578 = vmatprep.subr.bf16.mxu0 0
        %579 = vmatpush1.bf16.msra.mxu0 0
        %580 = vmatprep.subr.bf16.mxu0 0
        %581 = vmatpush1.bf16.msra.mxu0 0
        %582 = vmatprep.subr.bf16.mxu0 0
        %583 = vmatpush1.bf16.msra.mxu0 0
        %584 = vmatprep.subr.bf16.mxu0 0
        %585 = vmatpush1.bf16.msra.mxu0 0
        %586 = vmatprep.subr.bf16.mxu0 0
        %587 = vmatpush1.bf16.msra.mxu0 0
        %588 = vmatprep.subr.bf16.mxu0 0
        %589 = vmatpush1.bf16.msra.mxu0 0
        %590 = vmatprep.subr.bf16.mxu0 0
        %591 = vmatpush1.bf16.msra.mxu0 0
        %592 = vmatprep.subr.bf16.mxu0 0
        %593 = vmatpush1.bf16.msra.mxu0 0
        %594 = vmatprep.mubr.bf16.mxu0 0
        %595 = vmatmul.mubr.bf16.gmra.mrb[0].mxu0 %v560
        %v596 = vpop.f32.mrb[0].mxu0
        %v597 = vadd.f32 %v545, %v596
        %v598 = vpop.f32.mrb[0].mxu0
        %v599 = vpop.f32.mrb[0].mxu0
        %v600 = vpop.f32.mrb[0].mxu0
        %601 = vdwg.mxu0
        %vm602 = vcmask 130048
        %603 = vst.msk [vmem:[%s323] sm:$0xff] %vm602, %v597
        %s604 = sand.u32 %s225, 1
        %s605 = scalar_lea.sflag [#allocation3], %s604
        %s606 = sand.u32 %s225, 1
        %s607 = smul.addr %s606, 8
        %s608 = scalar_lea.vmem [#allocation2], %s607
        // Predicated region
        $region57: #{compressor_forward.1} parent=55 // pred_check
          %p609 = pneg %p235
        $region58: #{compressor_forward.1} parent=55 // pred_check_branch
          %611 = sbr.rel (%p609) target = $region60
        $region59: #{compressor_forward.1} parent=55 // pred_region
          %s613 = ssub.s32 128, 128
          %614 = vsyncadd %s605, %s613
          %s615 = smul.addr %s23, 128
          %s616 = scalar_lea.hbm %s9, %s615
          %s618 = sshll.u32 %s608, 4
          %s619 = int_to_ptr.vmem [resolvable:$true] %s618
          %621 = dma.vmem_to_hbm [thread:$0]  %s619, 128, %s616, %s605
        $region60: #{compressor_forward.1} parent=55 // pred_fallthru
          _
      $region56: #{compressor_forward.1} parent=5 // pred_fallthru
        _
      %p622 = scmp.le.s32.totalorder 2, %s18
      // Predicated region
      $region61: #{compressor_forward.1} parent=5 // pred_check
        %p623 = pneg %p622
      $region62: #{compressor_forward.1} parent=5 // pred_check_branch
        %625 = sbr.rel (%p623) target = $region64
      $region63: #{compressor_forward.1} parent=5 // pred_region
        %s626 = ssub.s32 %s18, 2
        // Predicated region
        $region65: #{compressor_forward.1} parent=63 // pred_check
          %p627 = pneg %p241
        $region66: #{compressor_forward.1} parent=63 // pred_check_branch
          %629 = sbr.rel (%p627) target = $region68
        $region67: #{compressor_forward.1} parent=63 // pred_region
          %s630 = sand.u32 %s226, 1
          %s631 = scalar_lea.sflag [#allocation3], %s630
          %s632 = sand.u32 %s226, 1
          %s633 = smul.addr %s632, 8
          %s634 = scalar_lea.vmem [#allocation2], %s633
          %635 = dma.done %s631, 128
        $region68: #{compressor_forward.1} parent=63 // pred_fallthru
          _
      $region64: #{compressor_forward.1} parent=5 // pred_fallthru
        _
    $region6: #{compressor_forward.1} parent=1 // loop_footer
      %s22 = sadd.s32 1, %s18
    $region7: #{compressor_forward.1} parent=1 // loop_footer_branch
      %17 = sbr.rel target = $region3
    $region8: #{compressor_forward.1} parent=1 // loop_exit
      _
    %636 = vsyncpa [#allocation3], 1
    %s637 = scalar_lea.sflag [#allocation3], 1
    %638 = vsyncpa %s637, 1

</llo_original>
